<compile_context>
chip_gen: v5e
topology: v5e:2x2
jax: 0.10.0
libtpu: 0.0.40
codegen_flags: <defaults>
</compile_context>

<pallas_src>
import jax
import jax.numpy as jnp
from jax.experimental import pallas as pl
from jax.experimental.pallas import tpu as pltpu

_LANE = 128


def _cdiv(a, b):
    return -(-a // b)


# ---------------------------------------------------------------------------
# Kernel
# ---------------------------------------------------------------------------
def _attention_kernel(x_ref, w_ref, b_ref, out_ref, score_ref):
    """Processes one (Bb, C, Tt) tile.

    x_ref:     (Bb, C, Tt)  input tile (VMEM)
    w_ref:     (1, C)       Linear(C->1) weight (VMEM, shared across grid)
    b_ref:     (1,)         Linear bias (SMEM scalar, f32)
    out_ref:   (Bb, C, Tt)  scaled output tile
    score_ref: (Bb, 1, Tt)  f32 attention scores
    """
    bias = b_ref[0]
    bb, c = x_ref.shape[0], x_ref.shape[1]

    if bb == 1 and c >= 16:
        # Per-batch tile: reduce over C on the MXU (idle otherwise). HIGHEST
        # precision is wall-clock free here (memory-bound, vex-slot slack) and
        # keeps f32 inputs bit-faithful to the f32 reference.
        x = x_ref[0]                                            # (C, Tt)
        w = w_ref[...].astype(x.dtype)                          # (1, C)
        s = jax.lax.dot_general(
            w, x, (((1,), (0,)), ((), ())),
            precision=jax.lax.Precision.HIGHEST,
            preferred_element_type=jnp.float32)                 # (1, Tt) f32
        s = jax.nn.sigmoid(jnp.tanh(s + bias))                  # (1, Tt) f32
        score_ref[0] = s
        out_ref[0] = (s * x).astype(out_ref.dtype)
    else:
        # Fused multi-batch tile (small per-batch planes) or tiny C: f32
        # broadcast-multiply + sublane reduce; blocks are small by
        # construction so the extra VALU work is hidden under the DMA.
        xf = x_ref[...].astype(jnp.float32)                     # (Bb, C, Tt)
        w = w_ref[...].astype(jnp.float32)[:, :, None]          # (1, C, 1)
        s = jnp.sum(xf * w, axis=1, keepdims=True) + bias       # (Bb, 1, Tt)
        s = jax.nn.sigmoid(jnp.tanh(s))
        score_ref[...] = s
        out_ref[...] = (s * xf).astype(out_ref.dtype)


# ---------------------------------------------------------------------------
# Tiling heuristics
# ---------------------------------------------------------------------------
def _scoped_vmem_bytes():
    """Generation-aware scoped-VMEM request (v5e/v6e: 64 MiB, v7x: 32 MiB)."""
    phys = 64 << 20                       # conservative default: v7x per-TC VMEM
    try:
        info = pltpu.get_tpu_info()
        phys = int(getattr(info, "vmem_capacity_bytes", phys))
    except Exception:
        pass
    return min(max(phys // 2, 16 << 20), 64 << 20)


def _choose_tiles(B, C, T_pad, itemsize, scoped_vmem):
    """Pick (Bb, Tt) for the (batch, time) grid — byte-based and dtype-aware."""
    # Channel axis as it actually sits in VMEM (sublane padding; packed dtypes
    # pad to 16/32 rows).
    sub = 8 * max(1, 4 // max(1, itemsize))
    c_pad = _cdiv(C, sub) * sub
    bytes_per_t = c_pad * itemsize

    # Per-buffer cap: 1-4 MiB (HBM-roofline sweet spot) with headroom for the
    # double-buffered in+out(+score) working set (~4-5x one buffer).
    block_cap = min(4 << 20, max(scoped_vmem // 6, 1 << 20))
    fuse_target = 2 << 20

    # Time tile: multiple of 128, as large as the byte cap allows.
    # TODO(synk): for extreme C (c_pad*128*itemsize > block_cap) a C-split
    # accumulation grid would be needed; not implemented (Tt=128 minimum).
    t_tile = max(_LANE, min(T_pad, (block_cap // bytes_per_t) // _LANE * _LANE))

    # Batch tile: fuse batches when a single-batch full-T block is small, so
    # small-C / large-B inputs don't degenerate into tiny per-step DMAs.
    blk_bytes = bytes_per_t * t_tile
    if t_tile >= T_pad and blk_bytes < fuse_target:
        b_tile = min(B, max(1, fuse_target // blk_bytes))
    else:
        b_tile = 1

    # Guarantee >=4 grid steps for non-tiny problems: restores DMA/compute
    # overlap in the Pallas pipeline and lets v7x shard across both cores.
    total_bytes = B * bytes_per_t * T_pad
    if total_bytes >= (2 << 20):
        while _cdiv(B, b_tile) * _cdiv(T_pad, t_tile) < 4:
            if t_tile > _LANE:
                t_tile = max(_LANE, (t_tile // 2) // _LANE * _LANE)
            elif b_tile > 1:
                b_tile = max(1, b_tile // 2)
            else:
                break
    return b_tile, t_tile


# ---------------------------------------------------------------------------
# Wrapper
# ---------------------------------------------------------------------------
def attention_forward(x, weight, bias):
    """x: (B, C, T); weight: (1, C); bias: (1,).

    Returns (out (B, C, T) in x.dtype, score (B*T, 1) f32), matching the
    PyTorch module's (out, output_score).
    """
    B, C, T = x.shape
    itemsize = jnp.dtype(x.dtype).itemsize
    w2 = jnp.asarray(weight).reshape(1, C).astype(x.dtype)   # pre-cast: no per-step cast
    b1 = jnp.asarray(bias, jnp.float32).reshape(1)

    # Pad T to a multiple of 128 so every tile is lane-dense and 128-aligned.
    T_pad = _cdiv(T, _LANE) * _LANE
    x_p = x if T_pad == T else jnp.pad(x, ((0, 0), (0, 0), (0, T_pad - T)))

    scoped_vmem = _scoped_vmem_bytes()
    Bb, Tt = _choose_tiles(B, C, T_pad, itemsize, scoped_vmem)
    grid = (_cdiv(B, Bb), _cdiv(T_pad, Tt))

    cost = pl.CostEstimate(
        flops=3 * B * C * T_pad,                               # linear (2*C/t) + scale
        transcendentals=2 * B * T_pad,                         # tanh + sigmoid per (b,t)
        bytes_accessed=itemsize * (2 * B * C * T_pad + C) + 4 * (B * T_pad + 1),
    )

    out, score = pl.pallas_call(
        _attention_kernel,
        out_shape=(
            jax.ShapeDtypeStruct((B, C, T_pad), x.dtype),
            jax.ShapeDtypeStruct((B, 1, T_pad), jnp.float32),
        ),
        grid=grid,
        in_specs=[
            pl.BlockSpec((Bb, C, Tt), lambda b, t: (b, 0, t)),       # input tile
            pl.BlockSpec((1, C), lambda b, t: (0, 0)),               # shared weight
            pl.BlockSpec(memory_space=pltpu.MemorySpace.SMEM),       # scalar bias
        ],
        out_specs=(
            pl.BlockSpec((Bb, C, Tt), lambda b, t: (b, 0, t)),       # scaled output
            pl.BlockSpec((Bb, 1, Tt), lambda b, t: (b, 0, t)),       # lane-dense score
        ),
        compiler_params=pltpu.CompilerParams(
            dimension_semantics=("parallel", "parallel"),
            vmem_limit_bytes=scoped_vmem,
        ),
        cost_estimate=cost,
    )(x_p, w2, b1)

    if T_pad != T:
        out = out[:, :, :T]
        score = score[:, :, :T]
    # Match the PyTorch output_score layout: rows ordered (b, t) -> (B*T, 1).
    output_score = score[:, 0, :].reshape(B * T, 1)
    return out, output_score


# ---------------------------------------------------------------------------
# Pure-JAX reference (exact f32, no dot -> no TPU matmul-precision ambiguity)
# ---------------------------------------------------------------------------
def _reference(x, weight, bias):
    B, C, T = x.shape
    flat = jnp.transpose(x, (0, 2, 1)).reshape(-1, C).astype(jnp.float32)  # (B*T, C)
    w_row = jnp.asarray(weight, jnp.float32).reshape(1, C)
    s = jnp.sum(flat * w_row, axis=1, keepdims=True) + jnp.asarray(bias, jnp.float32)
    s = jax.nn.sigmoid(jnp.tanh(s))                                        # (B*T, 1)
    out = (s.reshape(B, 1, T) * x).astype(x.dtype)
    return out, s


def _check(B, C, T, key, atol, rtol):
    kx, kw, kb = jax.random.split(key, 3)
    x = jax.random.normal(kx, (B, C, T), dtype=jnp.float32)
    weight = jax.random.normal(kw, (1, C), dtype=jnp.float32) * 0.5
    bias = jax.random.normal(kb, (1,), dtype=jnp.float32) * 0.1

    out, score = attention_forward(x, weight, bias)
    out = jax.block_until_ready(out)
    score = jax.block_until_ready(score)

    ref_out, ref_score = _reference(x, weight, bias)
    assert out.shape == (B, C, T)
    assert score.shape == (B * T, 1)
    assert jnp.allclose(score, ref_score, atol=atol, rtol=rtol), "score mismatch"
    assert jnp.allclose(out, ref_out, atol=atol, rtol=rtol), "out mismatch"


if __name__ == "__main__":
    key = jax.random.PRNGKey(0)
    k1, k2 = jax.random.split(key)

    # Small shape consistent with the module (batch=2, channel_num=4, seq=16):
    # exercises T-padding (16 -> 128) and the fused multi-batch path, grid=(1,1).
    _check(2, 4, 16, k1, atol=1e-5, rtol=1e-5)

    # Larger shape: per-batch MXU path with HIGHEST precision and T tiling
    # (Bb=1, Tt=2048, grid=(2,2)); tolerance is tight because the contraction
    # now runs at full f32 precision on the MXU.
    _check(2, 256, 4096, k2, atol=1e-4, rtol=1e-4)

    print("KERNEL_OK")
</pallas_src>

<mosaic_0001>
module attributes {stable_mosaic.version = 11 : i64} {
  func.func @_attention_kernel(%arg0: i32, %arg1: i32, %arg2: memref<2x4x128xf32, #tpu.memory_space<vmem>>, %arg3: memref<1x4xf32, #tpu.memory_space<vmem>>, %arg4: memref<1xf32, #tpu.memory_space<smem>>, %arg5: memref<2x4x128xf32, #tpu.memory_space<vmem>>, %arg6: memref<2x1x128xf32, #tpu.memory_space<vmem>>) attributes {dimension_semantics = [#tpu.dimension_semantics<parallel>, #tpu.dimension_semantics<parallel>], iteration_bounds = array<i64: 1, 1>, scalar_prefetch = 0 : i64, scratch_operands = 0 : i64, tpu.core_type = #tpu.core_type<tc>, window_params = [{transform_indices = @transform_0, window_bounds = array<i64: 2, 4, 128>}, {pipeline_mode = #tpu.pipeline_mode<synchronous>, transform_indices = @transform_1, window_bounds = array<i64: 1, 4>}, {transform_indices = @transform_2, window_bounds = array<i64: 1>}, {transform_indices = @transform_3, window_bounds = array<i64: 2, 4, 128>}, {transform_indices = @transform_4, window_bounds = array<i64: 2, 1, 128>}]} {
    %c0 = arith.constant 0 : index
    %0 = memref.load %arg4[%c0] : memref<1xf32, #tpu.memory_space<smem>>
    %c0_0 = arith.constant 0 : index
    %c0_1 = arith.constant 0 : index
    %c0_2 = arith.constant 0 : index
    %1 = vector.load %arg2[%c0_0, %c0_1, %c0_2] : memref<2x4x128xf32, #tpu.memory_space<vmem>>, vector<2x4x128xf32>
    %c0_3 = arith.constant 0 : index
    %c0_4 = arith.constant 0 : index
    %2 = vector.load %arg3[%c0_3, %c0_4] : memref<1x4xf32, #tpu.memory_space<vmem>>, vector<1x4xf32>
    %3 = vector.shape_cast %2 : vector<1x4xf32> to vector<1x4x1xf32>
    %4 = vector.broadcast %3 : vector<1x4x1xf32> to vector<2x4x128xf32>
    %5 = arith.mulf %1, %4 : vector<2x4x128xf32>
    %cst = arith.constant dense<0.000000e+00> : vector<2x128xf32>
    %6 = vector.multi_reduction <add>, %5, %cst [1] : vector<2x4x128xf32> to vector<2x128xf32>
    %7 = vector.shape_cast %6 : vector<2x128xf32> to vector<2x1x128xf32>
    %8 = vector.broadcast %0 : f32 to vector<2x1x128xf32>
    %9 = arith.addf %7, %8 : vector<2x1x128xf32>
    %10 = math.tanh %9 : vector<2x1x128xf32>
    %11 = arith.negf %10 : vector<2x1x128xf32>
    %12 = math.exp %11 : vector<2x1x128xf32>
    %cst_5 = arith.constant 1.000000e+00 : f32
    %13 = vector.broadcast %cst_5 : f32 to vector<2x1x128xf32>
    %14 = arith.addf %13, %12 : vector<2x1x128xf32>
    %15 = arith.divf %13, %14 : vector<2x1x128xf32>
    %c0_6 = arith.constant 0 : index
    %c0_7 = arith.constant 0 : index
    %c0_8 = arith.constant 0 : index
    %16 = vector.load %arg6[%c0_6, %c0_7, %c0_8] : memref<2x1x128xf32, #tpu.memory_space<vmem>>, vector<2x1x128xf32>
    tpu.vector_store %arg6[%c0_6, %c0_7, %c0_8], %15 {strides = array<i32>} : memref<2x1x128xf32, #tpu.memory_space<vmem>>, vector<2x1x128xf32>,
    %17 = vector.broadcast %15 : vector<2x1x128xf32> to vector<2x4x128xf32>
    %18 = arith.mulf %17, %1 : vector<2x4x128xf32>
    %c0_9 = arith.constant 0 : index
    %c0_10 = arith.constant 0 : index
    %c0_11 = arith.constant 0 : index
    %19 = vector.load %arg5[%c0_9, %c0_10, %c0_11] : memref<2x4x128xf32, #tpu.memory_space<vmem>>, vector<2x4x128xf32>
    tpu.vector_store %arg5[%c0_9, %c0_10, %c0_11], %18 {strides = array<i32>} : memref<2x4x128xf32, #tpu.memory_space<vmem>>, vector<2x4x128xf32>,
    return
  }
  func.func @transform_0(%arg0: i32, %arg1: i32) -> (i32, i32, i32) {
    %c0_i32 = arith.constant 0 : i32
    %c0_i32_0 = arith.constant 0 : i32
    return %arg0, %c0_i32, %arg1 : i32, i32, i32
  }
  func.func @transform_1(%arg0: i32, %arg1: i32) -> (i32, i32) {
    %c0_i32 = arith.constant 0 : i32
    %c0_i32_0 = arith.constant 0 : i32
    %c0_i32_1 = arith.constant 0 : i32
    return %c0_i32, %c0_i32_0 : i32, i32
  }
  func.func @transform_2(%arg0: i32, %arg1: i32) -> i32 {
    %c0_i32 = arith.constant 0 : i32
    %c0_i32_0 = arith.constant 0 : i32
    return %c0_i32 : i32
  }
  func.func @transform_3(%arg0: i32, %arg1: i32) -> (i32, i32, i32) {
    %c0_i32 = arith.constant 0 : i32
    %c0_i32_0 = arith.constant 0 : i32
    return %arg0, %c0_i32, %arg1 : i32, i32, i32
  }
  func.func @transform_4(%arg0: i32, %arg1: i32) -> (i32, i32, i32) {
    %c0_i32 = arith.constant 0 : i32
    %c0_i32_0 = arith.constant 0 : i32
    return %arg0, %c0_i32, %arg1 : i32, i32, i32
  }
}

</mosaic_0001>

<llo_original>
// kernel: tpu_custom_call.1
$region0: #{tpu_custom_call.1}
  #allocation0 [shape = 'u32[]', space=smem, size = 0x4, offset = 0x4, fixed_abs, tag = 'smem constant byte address 0x4 - core index']
  #allocation1 [shape = 'u32[72,128]{1,0:T(1,128)}', space=vmem, size = 0x9000, scoped, tag = 'internal scratch']
  #allocation2 [shape = 'f32[1]{0:T(128)S(6)}', space=smem, size = 0x200, scoped, tag = 'scoped memory for tpu_custom_call.1']
  %s0 = inlined_call_operand.hbm [shape: f32[2,4,128], index: 0, kind: input, shape index: {}]
  %s1 = inlined_call_operand.vmem [shape: f32[1,4], index: 1, kind: input, shape index: {}]
  %s2 = inlined_call_operand.<no memory space> [shape: f32[1], index: 2, kind: input, shape index: {}]
  %s3 = inlined_call_operand.hbm [shape: f32[2,4,128], index: 3, kind: output, shape index: {0}]
  %s4 = inlined_call_operand.hbm [shape: f32[2,1,128], index: 4, kind: output, shape index: {1}]
  %5 = xla_tuple %s3, %s4
  %s6 = sld [smem:[#allocation0]]
  $region34: #{tpu_custom_call.1} parent=0
    _
  %s8 = ssub.s32 1, %s6
  %s9 = scalar_select 0, %s8, %s6
  %10 = sst [smem:[#allocation2]] %s2
  $region1: #{tpu_custom_call.1} parent=0
    #allocation3 [shape = 'u8[4096]{0}', space=vmem, size = 0x1000, scoped, tag = 'input window, operand 0, single buffered']
    #allocation4 [shape = 's32[1]{0}', space=sflag, size = 0x4, scoped, tag = 'scoped memory for tpu_custom_call.1']
    #allocation5 [shape = 's32[1]{0}', space=sflag, size = 0x4, scoped, tag = 'scoped memory for tpu_custom_call.1']
    #allocation6 [shape = 'u8[4096]{0}', space=vmem, size = 0x1000, scoped, tag = 'output window, operand 0, single buffered']
    #allocation7 [shape = 'u8[1024]{0}', space=vmem, size = 0x400, scoped, tag = 'output window, operand 1, single buffered']
    #allocation8 [shape = 's32[1]{0}', space=sflag, size = 0x4, scoped, tag = 'scoped memory for tpu_custom_call.1']
    %11 = vsyncpa [#allocation4], 0
    %12 = vsyncpa [#allocation5], 0
    %13 = vsyncpa [#allocation8], 0
    // Predicated region
    $region2: #{tpu_custom_call.1} parent=1 // pred_check
      _
    $region3: #{tpu_custom_call.1} parent=1 // pred_check_branch
      %15 = sbr.rel (0) target = $region5
    $region4: #{tpu_custom_call.1} parent=1 // pred_region
      %17 = vsyncadd [#allocation4], 0
      %s18 = sshll.u32 %s0, 4
      %s19 = int_to_ptr.hbm [resolvable:$true] %s18
      %s20 = sshll.u32 [#allocation3], 4
      %s21 = int_to_ptr.vmem [resolvable:$true] %s20
      %26 = dma.hbm_to_vmem [thread:$0]  %s19, 128, %s21, [#allocation4], 64, 64, 4
    $region5: #{tpu_custom_call.1} parent=1 // pred_fallthru
      _
    // Predicated region
    $region6: #{tpu_custom_call.1} parent=1 // pred_check
      _
    $region7: #{tpu_custom_call.1} parent=1 // pred_check_branch
      %28 = sbr.rel (0) target = $region9
    $region8: #{tpu_custom_call.1} parent=1 // pred_region
      _
    $region9: #{tpu_custom_call.1} parent=1 // pred_fallthru
      _
    // Predicated region
    $region10: #{tpu_custom_call.1} parent=1 // pred_check
      _
    $region11: #{tpu_custom_call.1} parent=1 // pred_check_branch
      %30 = sbr.rel (0) target = $region13
    $region12: #{tpu_custom_call.1} parent=1 // pred_region
      _
    $region13: #{tpu_custom_call.1} parent=1 // pred_fallthru
      _
    // Predicated region
    $region14: #{tpu_custom_call.1} parent=1 // pred_check
      _
    $region15: #{tpu_custom_call.1} parent=1 // pred_check_branch
      %32 = sbr.rel (0) target = $region17
    $region16: #{tpu_custom_call.1} parent=1 // pred_region
      %34 = dma.done [#allocation4], 128
    $region17: #{tpu_custom_call.1} parent=1 // pred_fallthru
      _
    %s35 = sld [smem:[#allocation2]]
    %v36 = vld [vmem:[#allocation3] sm:$0xf]
    %v37 = vld [vmem:[#allocation3 + $0x4] sm:$0xf]
    %v38 = vld [vmem:[%s1] sm:$0x1]
    %v39 = vperm.slane %v38, 0
    %v40 = vlaneseq
    %v41 = vshrl.u32 %v40, 7
    %43 = vset.pattern.permute.xlu0 %v41
    %44 = vperm.xlu0 %43, %v39
    %v45 = vpop.permute.xlu0 %44
    %v46 = vmul.f32 %v36, %v45
    %v47 = vmul.f32 %v37, %v45
    %vm48 = vcmask 1043456
    %v49 = vsel %vm48, %v46, 0.0
    %v50 = vrot.slane %v49, 4
    %v51 = vadd.f32 %v49, %v50
    %v52 = vrot.slane %v51, 2
    %v53 = vadd.f32 %v51, %v52
    %v54 = vrot.slane %v53, 1
    %v55 = vadd.f32 %v53, %v54
    %v56 = vsel %vm48, %v47, 0.0
    %v57 = vrot.slane %v56, 4
    %v58 = vadd.f32 %v56, %v57
    %v59 = vrot.slane %v58, 2
    %v60 = vadd.f32 %v58, %v59
    %v61 = vrot.slane %v60, 1
    %v62 = vadd.f32 %v60, %v61
    %v63 = vstv %s35
    %v64 = vadd.f32 %v55, %v63
    %v65 = vadd.f32 %v62, %v63
    %v66 = vtanh.pop %v64
    %v67 = vtanh.pop %v65
    %v68 = vxor.u32 %v66, 2147483648
    %v69 = vxor.u32 %v67, 2147483648
    %v70 = vmul.f32 %v68, 1.442695
    %v71 = vpow.pop %v70
    %v72 = vmul.f32 %v69, 1.442695
    %v73 = vpow.pop %v72
    %v74 = vadd.f32 %v71, 1.0
    %v75 = vadd.f32 %v73, 1.0
    %v76 = vrcp.pop %v74
    %v77 = vmul.f32 %v74, %v76
    %v78 = vsub.f32 1.0, %v77
    %v79 = vmul.f32 %v76, %v78
    %v80 = vadd.f32 %v76, %v79
    %vm81 = vweird.f32 %v74
    %vm82 = vweird.f32 %v76
    %vm83 = vmor %vm81, %vm82
    %v84 = vsel %vm83, %v76, %v80
    %v85 = vand.u32 2147483647, %v74
    %vm86 = vcmp.eq.f32.partialorder %v85, 8.507059e+37
    %v87 = vand.u32 %v74, 2147483648
    %v88 = vor.u32 1.1754944e-38, %v87
    %v89 = vsel %vm86, %v88, %v84
    %v90 = vmul.f32 1.0, %v89
    %v91 = vrcp.pop %v75
    %v92 = vmul.f32 %v75, %v91
    %v93 = vsub.f32 1.0, %v92
    %v94 = vmul.f32 %v91, %v93
    %v95 = vadd.f32 %v91, %v94
    %vm96 = vweird.f32 %v75
    %vm97 = vweird.f32 %v91
    %vm98 = vmor %vm96, %vm97
    %v99 = vsel %vm98, %v91, %v95
    %v100 = vand.u32 2147483647, %v75
    %vm101 = vcmp.eq.f32.partialorder %v100, 8.507059e+37
    %v102 = vand.u32 %v75, 2147483648
    %v103 = vor.u32 1.1754944e-38, %v102
    %v104 = vsel %vm101, %v103, %v99
    %v105 = vmul.f32 1.0, %v104
    %106 = vst [vmem:[#allocation7] sm:$0x1] %v90
    %107 = vst [vmem:[#allocation7 + $0x1] sm:$0x1] %v105
    %v108 = vmul.f32 %v90, %v36
    %v109 = vmul.f32 %v105, %v37
    %110 = vst [vmem:[#allocation6] sm:$0xf] %v108
    %111 = vst [vmem:[#allocation6 + $0x4] sm:$0xf] %v109
    // Predicated region
    $region18: #{tpu_custom_call.1} parent=1 // pred_check
      _
    $region19: #{tpu_custom_call.1} parent=1 // pred_check_branch
      %113 = sbr.rel (0) target = $region21
    $region20: #{tpu_custom_call.1} parent=1 // pred_region
      %115 = vsyncadd [#allocation5], 0
      %s116 = sshll.u32 [#allocation6], 4
      %s117 = int_to_ptr.vmem [resolvable:$true] %s116
      %s118 = sshll.u32 %s3, 4
      %s119 = int_to_ptr.hbm [resolvable:$true] %s118
      %124 = dma.vmem_to_hbm [thread:$0]  %s117, 128, %s119, [#allocation5], 64, 64, 4
    $region21: #{tpu_custom_call.1} parent=1 // pred_fallthru
      _
    // Predicated region
    $region22: #{tpu_custom_call.1} parent=1 // pred_check
      _
    $region23: #{tpu_custom_call.1} parent=1 // pred_check_branch
      %126 = sbr.rel (0) target = $region25
    $region24: #{tpu_custom_call.1} parent=1 // pred_region
      %128 = vsyncadd [#allocation8], 0
      %s129 = sshll.u32 [#allocation7], 4
      %s130 = int_to_ptr.vmem [resolvable:$true] %s129
      %s131 = sshll.u32 %s4, 4
      %s132 = int_to_ptr.hbm [resolvable:$true] %s131
      %137 = dma.vmem_to_hbm [thread:$0]  %s130, 32, %s132, [#allocation8], 16, 16, 1
    $region25: #{tpu_custom_call.1} parent=1 // pred_fallthru
      _
    // Predicated region
    $region26: #{tpu_custom_call.1} parent=1 // pred_check
      _
    $region27: #{tpu_custom_call.1} parent=1 // pred_check_branch
      %139 = sbr.rel (0) target = $region29
    $region28: #{tpu_custom_call.1} parent=1 // pred_region
      %141 = dma.done [#allocation5], 128
    $region29: #{tpu_custom_call.1} parent=1 // pred_fallthru
      _
    // Predicated region
    $region30: #{tpu_custom_call.1} parent=1 // pred_check
      _
    $region31: #{tpu_custom_call.1} parent=1 // pred_check_branch
      %143 = sbr.rel (0) target = $region33
    $region32: #{tpu_custom_call.1} parent=1 // pred_region
      %145 = dma.done [#allocation8], 32
    $region33: #{tpu_custom_call.1} parent=1 // pred_fallthru
      _
    %146 = vsyncpa [#allocation4], 1
    %147 = vsyncpa [#allocation5], 1
    %148 = vsyncpa [#allocation8], 1

</llo_original>
